<compile_context>
chip_gen: v5e
topology: v5e:2x2
jax: 0.10.0
libtpu: 0.0.40
codegen_flags: <defaults>
</compile_context>

<pallas_src>
import functools

import jax
import jax.numpy as jnp
from jax.experimental import pallas as pl
from jax.experimental.pallas import tpu as pltpu


def _conv_diff_kernel(x_ref, w_ref, b_ref, o_ref, *, width):
    """Fused (conv1 - conv2) == conv(x, w1-w2) + (b1-b2), all batches in one shot.

    x_ref : (N, 1, HW)     VMEM  input, spatial flattened onto lanes (HW = H*W)
    w_ref : (1, Cout, 9)   VMEM  fused weight taps (w1 - w2), Cout on sublanes,
                                 taps row-major in (dy, dx)
    b_ref : (1, Cout, 1)   VMEM  fused bias (b1 - b2)
    o_ref : (N, Cout, HW)  VMEM  flat output; positions with oy >= Ho or
                                 ox >= Wo hold wrap-around garbage and are
                                 sliced away in the wrapper.
    """
    hw = x_ref.shape[-1]
    x = x_ref[...]                                        # (N, 1, HW) f32

    # Hoist the per-tap weight views (each computed once; each is consumed by
    # exactly one wide FMA below, so no repeated broadcast_in_dim in the loop).
    w_taps = [w_ref[:, :, k:k + 1] for k in range(9)]     # each (1, Cout, 1)
    bias = b_ref[...]                                     # (1, Cout, 1)

    acc = None
    k = 0
    for dy in range(3):
        for dx in range(3):
            off = dy * width + dx
            # Lane shift on the XLU: shifted[..., p] = x[..., (p + off) mod HW].
            # For all VALID output positions p = oy*W + ox (oy < Ho, ox < Wo)
            # we have p + off < HW, so no wrap-around affects kept outputs.
            shifted = x if off == 0 else pltpu.roll(x, shift=hw - off, axis=2)
            term = w_taps[k] * shifted                    # (N, Cout, HW) wide FMA
            acc = term if acc is None else acc + term
            k += 1

    # One vectorized epilogue: bias add + cast + single unmasked full-block store.
    o_ref[...] = (acc + bias).astype(o_ref.dtype)


def conv_sub(x_nchw, w1_oihw, b1, w2_oihw, b2):
    """Wrapper: NCHW in, NCHW out (matches PyTorch).  Cin must be 1."""
    N, Cin, H, W = x_nchw.shape
    assert Cin == 1, "module applies the convs to a 1-channel input"
    Cout, _, KH, KW = w1_oihw.shape
    assert (KH, KW) == (3, 3)
    Ho, Wo = H - 2, W - 2
    HW = H * W

    # Algebraic fusion of the two convolutions (pure parameter prep, done once).
    w_diff = (w1_oihw - w2_oihw).reshape(1, Cout, 9).astype(jnp.float32)  # (1,Cout,9)
    b_diff = (b1 - b2).reshape(1, Cout, 1).astype(jnp.float32)            # (1,Cout,1)

    # NCHW with C==1 flattened to lanes: free, contiguous reshape (no transpose).
    x_flat = x_nchw.reshape(N, 1, HW).astype(jnp.float32)

    kernel = functools.partial(_conv_diff_kernel, width=W)

    out_flat = pl.pallas_call(
        kernel,
        out_shape=jax.ShapeDtypeStruct((N, Cout, HW), x_nchw.dtype),
        # Single invocation (no grid): whole arrays resident in VMEM (~64 KB).
        in_specs=[
            pl.BlockSpec(memory_space=pltpu.MemorySpace.VMEM),   # x
            pl.BlockSpec(memory_space=pltpu.MemorySpace.VMEM),   # fused weight
            pl.BlockSpec(memory_space=pltpu.MemorySpace.VMEM),   # fused bias
        ],
        out_specs=pl.BlockSpec(memory_space=pltpu.MemorySpace.VMEM),
    )(x_flat, w_diff, b_diff)

    # VALID 3x3 / stride-1 output: keep only oy < Ho, ox < Wo (XLA slice, tiny).
    out = out_flat.reshape(N, Cout, H, W)[:, :, :Ho, :Wo]
    return out                                           # NCHW


def _reference(x_nchw, w1, b1, w2, b2):
    dn = ("NCHW", "OIHW", "NCHW")
    c1 = jax.lax.conv_general_dilated(x_nchw, w1, (1, 1), "VALID",
                                      dimension_numbers=dn) + b1.reshape(1, -1, 1, 1)
    c2 = jax.lax.conv_general_dilated(x_nchw, w2, (1, 1), "VALID",
                                      dimension_numbers=dn) + b2.reshape(1, -1, 1, 1)
    return c1 - c2


if __name__ == "__main__":
    key = jax.random.PRNGKey(0)
    k_x, k_w1, k_b1, k_w2, k_b2 = jax.random.split(key, 5)

    # Small shapes consistent with the module: 1-channel input, 16 output chans.
    N, Cin, H, W, Cout = 2, 1, 16, 16, 16
    x = jax.random.normal(k_x, (N, Cin, H, W), jnp.float32)

    # Deterministic parameter init (shapes per the module __init__).
    w1 = 0.1 * jax.random.normal(k_w1, (Cout, 1, 3, 3), jnp.float32)        # conv1
    b1 = 0.1 * jax.random.normal(k_b1, (Cout,), jnp.float32)
    w2_full = 0.1 * jax.random.normal(k_w2, (Cout, 16, 3, 3), jnp.float32)  # conv2
    b2 = 0.1 * jax.random.normal(k_b2, (Cout,), jnp.float32)
    w2 = w2_full[:, :Cin]   # see TODO(synk) above

    out = conv_sub(x, w1, b1, w2, b2)
    out = jax.block_until_ready(out)

    ref = _reference(x, w1, b1, w2, b2)
    assert out.shape == (N, Cout, H - 2, W - 2), out.shape
    assert jnp.allclose(out, ref, atol=1e-4, rtol=1e-4), "mismatch vs lax.conv reference"

    print("KERNEL_OK")
</pallas_src>

<mosaic_0001>
module attributes {stable_mosaic.version = 11 : i64} {
  func.func @_conv_diff_kernel(%arg0: memref<2x1x256xf32, #tpu.memory_space<vmem>>, %arg1: memref<1x16x9xf32, #tpu.memory_space<vmem>>, %arg2: memref<1x16x1xf32, #tpu.memory_space<vmem>>, %arg3: memref<2x16x256xf32, #tpu.memory_space<vmem>>) attributes {dimension_semantics = [], scalar_prefetch = 0 : i64, scratch_operands = 0 : i64, tpu.core_type = #tpu.core_type<tc>} {
    %c0 = arith.constant 0 : index
    %c0_0 = arith.constant 0 : index
    %c0_1 = arith.constant 0 : index
    %0 = vector.load %arg0[%c0, %c0_0, %c0_1] : memref<2x1x256xf32, #tpu.memory_space<vmem>>, vector<2x1x256xf32>
    %c0_2 = arith.constant 0 : index
    %c0_3 = arith.constant 0 : index
    %c0_4 = arith.constant 0 : index
    %1 = vector.load %arg1[%c0_2, %c0_3, %c0_4] : memref<1x16x9xf32, #tpu.memory_space<vmem>>, vector<1x16x1xf32>
    %c0_5 = arith.constant 0 : index
    %c0_6 = arith.constant 0 : index
    %c1 = arith.constant 1 : index
    %2 = vector.load %arg1[%c0_5, %c0_6, %c1] : memref<1x16x9xf32, #tpu.memory_space<vmem>>, vector<1x16x1xf32>
    %c0_7 = arith.constant 0 : index
    %c0_8 = arith.constant 0 : index
    %c2 = arith.constant 2 : index
    %3 = vector.load %arg1[%c0_7, %c0_8, %c2] : memref<1x16x9xf32, #tpu.memory_space<vmem>>, vector<1x16x1xf32>
    %c0_9 = arith.constant 0 : index
    %c0_10 = arith.constant 0 : index
    %c3 = arith.constant 3 : index
    %4 = vector.load %arg1[%c0_9, %c0_10, %c3] : memref<1x16x9xf32, #tpu.memory_space<vmem>>, vector<1x16x1xf32>
    %c0_11 = arith.constant 0 : index
    %c0_12 = arith.constant 0 : index
    %c4 = arith.constant 4 : index
    %5 = vector.load %arg1[%c0_11, %c0_12, %c4] : memref<1x16x9xf32, #tpu.memory_space<vmem>>, vector<1x16x1xf32>
    %c0_13 = arith.constant 0 : index
    %c0_14 = arith.constant 0 : index
    %c5 = arith.constant 5 : index
    %6 = vector.load %arg1[%c0_13, %c0_14, %c5] : memref<1x16x9xf32, #tpu.memory_space<vmem>>, vector<1x16x1xf32>
    %c0_15 = arith.constant 0 : index
    %c0_16 = arith.constant 0 : index
    %c6 = arith.constant 6 : index
    %7 = vector.load %arg1[%c0_15, %c0_16, %c6] : memref<1x16x9xf32, #tpu.memory_space<vmem>>, vector<1x16x1xf32>
    %c0_17 = arith.constant 0 : index
    %c0_18 = arith.constant 0 : index
    %c7 = arith.constant 7 : index
    %8 = vector.load %arg1[%c0_17, %c0_18, %c7] : memref<1x16x9xf32, #tpu.memory_space<vmem>>, vector<1x16x1xf32>
    %c0_19 = arith.constant 0 : index
    %c0_20 = arith.constant 0 : index
    %c8 = arith.constant 8 : index
    %9 = vector.load %arg1[%c0_19, %c0_20, %c8] : memref<1x16x9xf32, #tpu.memory_space<vmem>>, vector<1x16x1xf32>
    %c0_21 = arith.constant 0 : index
    %c0_22 = arith.constant 0 : index
    %c0_23 = arith.constant 0 : index
    %10 = vector.load %arg2[%c0_21, %c0_22, %c0_23] : memref<1x16x1xf32, #tpu.memory_space<vmem>>, vector<1x16x1xf32>
    %11 = vector.broadcast %1 : vector<1x16x1xf32> to vector<2x16x256xf32>
    %12 = vector.broadcast %0 : vector<2x1x256xf32> to vector<2x16x256xf32>
    %13 = arith.mulf %11, %12 : vector<2x16x256xf32>
    %c255_i32 = arith.constant 255 : i32
    %14 = tpu.dynamic_rotate %0 by %c255_i32 dim 2 : vector<2x1x256xf32>, i32 -> vector<2x1x256xf32>
    %15 = vector.broadcast %2 : vector<1x16x1xf32> to vector<2x16x256xf32>
    %16 = vector.broadcast %14 : vector<2x1x256xf32> to vector<2x16x256xf32>
    %17 = arith.mulf %15, %16 : vector<2x16x256xf32>
    %18 = arith.addf %13, %17 : vector<2x16x256xf32>
    %c254_i32 = arith.constant 254 : i32
    %19 = tpu.dynamic_rotate %0 by %c254_i32 dim 2 : vector<2x1x256xf32>, i32 -> vector<2x1x256xf32>
    %20 = vector.broadcast %3 : vector<1x16x1xf32> to vector<2x16x256xf32>
    %21 = vector.broadcast %19 : vector<2x1x256xf32> to vector<2x16x256xf32>
    %22 = arith.mulf %20, %21 : vector<2x16x256xf32>
    %23 = arith.addf %18, %22 : vector<2x16x256xf32>
    %c240_i32 = arith.constant 240 : i32
    %24 = tpu.dynamic_rotate %0 by %c240_i32 dim 2 : vector<2x1x256xf32>, i32 -> vector<2x1x256xf32>
    %25 = vector.broadcast %4 : vector<1x16x1xf32> to vector<2x16x256xf32>
    %26 = vector.broadcast %24 : vector<2x1x256xf32> to vector<2x16x256xf32>
    %27 = arith.mulf %25, %26 : vector<2x16x256xf32>
    %28 = arith.addf %23, %27 : vector<2x16x256xf32>
    %c239_i32 = arith.constant 239 : i32
    %29 = tpu.dynamic_rotate %0 by %c239_i32 dim 2 : vector<2x1x256xf32>, i32 -> vector<2x1x256xf32>
    %30 = vector.broadcast %5 : vector<1x16x1xf32> to vector<2x16x256xf32>
    %31 = vector.broadcast %29 : vector<2x1x256xf32> to vector<2x16x256xf32>
    %32 = arith.mulf %30, %31 : vector<2x16x256xf32>
    %33 = arith.addf %28, %32 : vector<2x16x256xf32>
    %c238_i32 = arith.constant 238 : i32
    %34 = tpu.dynamic_rotate %0 by %c238_i32 dim 2 : vector<2x1x256xf32>, i32 -> vector<2x1x256xf32>
    %35 = vector.broadcast %6 : vector<1x16x1xf32> to vector<2x16x256xf32>
    %36 = vector.broadcast %34 : vector<2x1x256xf32> to vector<2x16x256xf32>
    %37 = arith.mulf %35, %36 : vector<2x16x256xf32>
    %38 = arith.addf %33, %37 : vector<2x16x256xf32>
    %c224_i32 = arith.constant 224 : i32
    %39 = tpu.dynamic_rotate %0 by %c224_i32 dim 2 : vector<2x1x256xf32>, i32 -> vector<2x1x256xf32>
    %40 = vector.broadcast %7 : vector<1x16x1xf32> to vector<2x16x256xf32>
    %41 = vector.broadcast %39 : vector<2x1x256xf32> to vector<2x16x256xf32>
    %42 = arith.mulf %40, %41 : vector<2x16x256xf32>
    %43 = arith.addf %38, %42 : vector<2x16x256xf32>
    %c223_i32 = arith.constant 223 : i32
    %44 = tpu.dynamic_rotate %0 by %c223_i32 dim 2 : vector<2x1x256xf32>, i32 -> vector<2x1x256xf32>
    %45 = vector.broadcast %8 : vector<1x16x1xf32> to vector<2x16x256xf32>
    %46 = vector.broadcast %44 : vector<2x1x256xf32> to vector<2x16x256xf32>
    %47 = arith.mulf %45, %46 : vector<2x16x256xf32>
    %48 = arith.addf %43, %47 : vector<2x16x256xf32>
    %c222_i32 = arith.constant 222 : i32
    %49 = tpu.dynamic_rotate %0 by %c222_i32 dim 2 : vector<2x1x256xf32>, i32 -> vector<2x1x256xf32>
    %50 = vector.broadcast %9 : vector<1x16x1xf32> to vector<2x16x256xf32>
    %51 = vector.broadcast %49 : vector<2x1x256xf32> to vector<2x16x256xf32>
    %52 = arith.mulf %50, %51 : vector<2x16x256xf32>
    %53 = arith.addf %48, %52 : vector<2x16x256xf32>
    %54 = vector.broadcast %10 : vector<1x16x1xf32> to vector<2x16x256xf32>
    %55 = arith.addf %53, %54 : vector<2x16x256xf32>
    %c0_24 = arith.constant 0 : index
    %c0_25 = arith.constant 0 : index
    %c0_26 = arith.constant 0 : index
    %56 = vector.load %arg3[%c0_24, %c0_25, %c0_26] : memref<2x16x256xf32, #tpu.memory_space<vmem>>, vector<2x16x256xf32>
    tpu.vector_store %arg3[%c0_24, %c0_25, %c0_26], %55 {strides = array<i32>} : memref<2x16x256xf32, #tpu.memory_space<vmem>>, vector<2x16x256xf32>,
    return
  }
}

</mosaic_0001>

<llo_original>
// kernel: tpu_custom_call.1
$region0: #{tpu_custom_call.1}
  #allocation0 [shape = 'u32[]', space=smem, size = 0x4, offset = 0x4, fixed_abs, tag = 'smem constant byte address 0x4 - core index']
  #allocation1 [shape = 'u32[72,128]{1,0:T(1,128)}', space=vmem, size = 0x9000, scoped, tag = 'internal scratch']
  %s0 = inlined_call_operand.vmem [shape: f32[2,1,256], index: 0, kind: input, shape index: {}]
  %s1 = inlined_call_operand.vmem [shape: f32[1,16,9], index: 1, kind: input, shape index: {}]
  %s2 = inlined_call_operand.vmem [shape: f32[1,16,1], index: 2, kind: input, shape index: {}]
  %s3 = inlined_call_operand.hbm [shape: f32[2,16,256], index: 3, kind: output, shape index: {}]
  %s4 = sld [smem:[#allocation0]]
  $region22: #{tpu_custom_call.1} parent=0
    _
  %s6 = ssub.s32 1, %s4
  %s7 = scalar_select 0, %s6, %s4
  $region1: #{tpu_custom_call.1} parent=0
    #allocation2 [shape = 'u8[32768]{0}', space=vmem, size = 0x8000, scoped, tag = 'output window, operand 0, single buffered']
    #allocation3 [shape = 's32[1]{0}', space=sflag, size = 0x4, scoped, tag = 'scoped memory for tpu_custom_call.1']
    %8 = vsyncpa [#allocation3], 0
    // Predicated region
    $region2: #{tpu_custom_call.1} parent=1 // pred_check
      _
    $region3: #{tpu_custom_call.1} parent=1 // pred_check_branch
      %10 = sbr.rel (0) target = $region5
    $region4: #{tpu_custom_call.1} parent=1 // pred_region
      _
    $region5: #{tpu_custom_call.1} parent=1 // pred_fallthru
      _
    // Predicated region
    $region6: #{tpu_custom_call.1} parent=1 // pred_check
      _
    $region7: #{tpu_custom_call.1} parent=1 // pred_check_branch
      %12 = sbr.rel (0) target = $region9
    $region8: #{tpu_custom_call.1} parent=1 // pred_region
      _
    $region9: #{tpu_custom_call.1} parent=1 // pred_fallthru
      _
    // Predicated region
    $region10: #{tpu_custom_call.1} parent=1 // pred_check
      _
    $region11: #{tpu_custom_call.1} parent=1 // pred_check_branch
      %14 = sbr.rel (0) target = $region13
    $region12: #{tpu_custom_call.1} parent=1 // pred_region
      _
    $region13: #{tpu_custom_call.1} parent=1 // pred_fallthru
      _
    %v15 = vld [vmem:[%s0] sm:$0x3]
    %v16 = vld [vmem:[%s0 + $0x2] sm:$0x3]
    %v17 = vld [vmem:[%s1] sm:$0xff]
    %v18 = vld [vmem:[%s1 + $0x8] sm:$0xff]
    %v19 = vld [vmem:[%s2] sm:$0xff]
    %v20 = vld [vmem:[%s2 + $0x8] sm:$0xff]
    %22 = vset.pattern.permute.xlu0 0
    %23 = vperm.xlu0 %22, %v17
    %v24 = vpop.permute.xlu0 %23
    %27 = vset.pattern.permute.xlu0 0
    %28 = vperm.xlu0 %27, %v18
    %v29 = vpop.permute.xlu0 %28
    %v33 = vperm.slane %v15, 0
    %v34 = vperm.slane %v15, 1
    %v35 = vperm.slane %v16, 0
    %v36 = vperm.slane %v16, 1
    %v41 = vmul.f32 %v24, %v33
    %v42 = vmul.f32 %v24, %v34
    %v43 = vmul.f32 %v29, %v33
    %v44 = vmul.f32 %v29, %v34
    %v45 = vmul.f32 %v24, %v35
    %v46 = vmul.f32 %v24, %v36
    %v47 = vmul.f32 %v29, %v35
    %v48 = vmul.f32 %v29, %v36
    %49 = vrot.lane.b32.xlu0 %v33, 127
    %v50 = vpop.permute.xlu0 %49
    %51 = vrot.lane.b32.xlu0 %v35, 127
    %v52 = vpop.permute.xlu0 %51
    %53 = vrot.lane.b32.xlu0 %v34, 127
    %v54 = vpop.permute.xlu0 %53
    %55 = vrot.lane.b32.xlu0 %v36, 127
    %v56 = vpop.permute.xlu0 %55
    %v57 = vlaneseq
    %v58 = vand.u32 %v57, 127
    %vm59 = vcmp.lt.s32.totalorder %v58, 127
    %v60 = vsel %vm59, %v50, %v54
    %v61 = vsel %vm59, %v52, %v56
    %v62 = vsel %vm59, %v54, %v50
    %v63 = vsel %vm59, %v56, %v52
    %64 = vset.pattern.permute.xlu0 1
    %65 = vperm.xlu0 %64, %v17
    %v66 = vpop.permute.xlu0 %65
    %68 = vset.pattern.permute.xlu0 1
    %69 = vperm.xlu0 %68, %v18
    %v70 = vpop.permute.xlu0 %69
    %v72 = vperm.slane %v60, 0
    %v73 = vperm.slane %v62, 0
    %v74 = vperm.slane %v61, 0
    %v75 = vperm.slane %v63, 0
    %v76 = vmul.f32 %v66, %v72
    %v77 = vmul.f32 %v66, %v73
    %v78 = vmul.f32 %v70, %v72
    %v79 = vmul.f32 %v70, %v73
    %v80 = vmul.f32 %v66, %v74
    %v81 = vmul.f32 %v66, %v75
    %v82 = vmul.f32 %v70, %v74
    %v83 = vmul.f32 %v70, %v75
    %v84 = vadd.f32 %v41, %v76
    %v85 = vadd.f32 %v42, %v77
    %v86 = vadd.f32 %v43, %v78
    %v87 = vadd.f32 %v44, %v79
    %v88 = vadd.f32 %v45, %v80
    %v89 = vadd.f32 %v46, %v81
    %v90 = vadd.f32 %v47, %v82
    %v91 = vadd.f32 %v48, %v83
    %92 = vrot.lane.b32.xlu0 %v33, 126
    %v93 = vpop.permute.xlu0 %92
    %94 = vrot.lane.b32.xlu0 %v35, 126
    %v95 = vpop.permute.xlu0 %94
    %96 = vrot.lane.b32.xlu0 %v34, 126
    %v97 = vpop.permute.xlu0 %96
    %98 = vrot.lane.b32.xlu0 %v36, 126
    %v99 = vpop.permute.xlu0 %98
    %vm100 = vcmp.lt.s32.totalorder %v58, 126
    %v101 = vsel %vm100, %v93, %v97
    %v102 = vsel %vm100, %v95, %v99
    %v103 = vsel %vm100, %v97, %v93
    %v104 = vsel %vm100, %v99, %v95
    %105 = vset.pattern.permute.xlu0 2
    %106 = vperm.xlu0 %105, %v17
    %v107 = vpop.permute.xlu0 %106
    %109 = vset.pattern.permute.xlu0 2
    %110 = vperm.xlu0 %109, %v18
    %v111 = vpop.permute.xlu0 %110
    %v113 = vperm.slane %v101, 0
    %v114 = vperm.slane %v103, 0
    %v115 = vperm.slane %v102, 0
    %v116 = vperm.slane %v104, 0
    %v117 = vmul.f32 %v107, %v113
    %v118 = vmul.f32 %v107, %v114
    %v119 = vmul.f32 %v111, %v113
    %v120 = vmul.f32 %v111, %v114
    %v121 = vmul.f32 %v107, %v115
    %v122 = vmul.f32 %v107, %v116
    %v123 = vmul.f32 %v111, %v115
    %v124 = vmul.f32 %v111, %v116
    %v125 = vadd.f32 %v84, %v117
    %v126 = vadd.f32 %v85, %v118
    %v127 = vadd.f32 %v86, %v119
    %v128 = vadd.f32 %v87, %v120
    %v129 = vadd.f32 %v88, %v121
    %v130 = vadd.f32 %v89, %v122
    %v131 = vadd.f32 %v90, %v123
    %v132 = vadd.f32 %v91, %v124
    %133 = vrot.lane.b32.xlu0 %v33, 112
    %v134 = vpop.permute.xlu0 %133
    %135 = vrot.lane.b32.xlu0 %v35, 112
    %v136 = vpop.permute.xlu0 %135
    %137 = vrot.lane.b32.xlu0 %v34, 112
    %v138 = vpop.permute.xlu0 %137
    %139 = vrot.lane.b32.xlu0 %v36, 112
    %v140 = vpop.permute.xlu0 %139
    %vm141 = vcmp.lt.s32.totalorder %v58, 112
    %v142 = vsel %vm141, %v134, %v138
    %v143 = vsel %vm141, %v136, %v140
    %v144 = vsel %vm141, %v138, %v134
    %v145 = vsel %vm141, %v140, %v136
    %146 = vset.pattern.permute.xlu0 3
    %147 = vperm.xlu0 %146, %v17
    %v148 = vpop.permute.xlu0 %147
    %150 = vset.pattern.permute.xlu0 3
    %151 = vperm.xlu0 %150, %v18
    %v152 = vpop.permute.xlu0 %151
    %v154 = vperm.slane %v142, 0
    %v155 = vperm.slane %v144, 0
    %v156 = vperm.slane %v143, 0
    %v157 = vperm.slane %v145, 0
    %v158 = vmul.f32 %v148, %v154
    %v159 = vmul.f32 %v148, %v155
    %v160 = vmul.f32 %v152, %v154
    %v161 = vmul.f32 %v152, %v155
    %v162 = vmul.f32 %v148, %v156
    %v163 = vmul.f32 %v148, %v157
    %v164 = vmul.f32 %v152, %v156
    %v165 = vmul.f32 %v152, %v157
    %v166 = vadd.f32 %v125, %v158
    %v167 = vadd.f32 %v126, %v159
    %v168 = vadd.f32 %v127, %v160
    %v169 = vadd.f32 %v128, %v161
    %v170 = vadd.f32 %v129, %v162
    %v171 = vadd.f32 %v130, %v163
    %v172 = vadd.f32 %v131, %v164
    %v173 = vadd.f32 %v132, %v165
    %174 = vrot.lane.b32.xlu0 %v33, 111
    %v175 = vpop.permute.xlu0 %174
    %176 = vrot.lane.b32.xlu0 %v35, 111
    %v177 = vpop.permute.xlu0 %176
    %178 = vrot.lane.b32.xlu0 %v34, 111
    %v179 = vpop.permute.xlu0 %178
    %180 = vrot.lane.b32.xlu0 %v36, 111
    %v181 = vpop.permute.xlu0 %180
    %vm182 = vcmp.lt.s32.totalorder %v58, 111
    %v183 = vsel %vm182, %v175, %v179
    %v184 = vsel %vm182, %v177, %v181
    %v185 = vsel %vm182, %v179, %v175
    %v186 = vsel %vm182, %v181, %v177
    %187 = vset.pattern.permute.xlu0 4
    %188 = vperm.xlu0 %187, %v17
    %v189 = vpop.permute.xlu0 %188
    %191 = vset.pattern.permute.xlu0 4
    %192 = vperm.xlu0 %191, %v18
    %v193 = vpop.permute.xlu0 %192
    %v195 = vperm.slane %v183, 0
    %v196 = vperm.slane %v185, 0
    %v197 = vperm.slane %v184, 0
    %v198 = vperm.slane %v186, 0
    %v199 = vmul.f32 %v189, %v195
    %v200 = vmul.f32 %v189, %v196
    %v201 = vmul.f32 %v193, %v195
    %v202 = vmul.f32 %v193, %v196
    %v203 = vmul.f32 %v189, %v197
    %v204 = vmul.f32 %v189, %v198
    %v205 = vmul.f32 %v193, %v197
    %v206 = vmul.f32 %v193, %v198
    %v207 = vadd.f32 %v166, %v199
    %v208 = vadd.f32 %v167, %v200
    %v209 = vadd.f32 %v168, %v201
    %v210 = vadd.f32 %v169, %v202
    %v211 = vadd.f32 %v170, %v203
    %v212 = vadd.f32 %v171, %v204
    %v213 = vadd.f32 %v172, %v205
    %v214 = vadd.f32 %v173, %v206
    %215 = vrot.lane.b32.xlu0 %v33, 110
    %v216 = vpop.permute.xlu0 %215
    %217 = vrot.lane.b32.xlu0 %v35, 110
    %v218 = vpop.permute.xlu0 %217
    %219 = vrot.lane.b32.xlu0 %v34, 110
    %v220 = vpop.permute.xlu0 %219
    %221 = vrot.lane.b32.xlu0 %v36, 110
    %v222 = vpop.permute.xlu0 %221
    %vm223 = vcmp.lt.s32.totalorder %v58, 110
    %v224 = vsel %vm223, %v216, %v220
    %v225 = vsel %vm223, %v218, %v222
    %v226 = vsel %vm223, %v220, %v216
    %v227 = vsel %vm223, %v222, %v218
    %228 = vset.pattern.permute.xlu0 5
    %229 = vperm.xlu0 %228, %v17
    %v230 = vpop.permute.xlu0 %229
    %232 = vset.pattern.permute.xlu0 5
    %233 = vperm.xlu0 %232, %v18
    %v234 = vpop.permute.xlu0 %233
    %v236 = vperm.slane %v224, 0
    %v237 = vperm.slane %v226, 0
    %v238 = vperm.slane %v225, 0
    %v239 = vperm.slane %v227, 0
    %v240 = vmul.f32 %v230, %v236
    %v241 = vmul.f32 %v230, %v237
    %v242 = vmul.f32 %v234, %v236
    %v243 = vmul.f32 %v234, %v237
    %v244 = vmul.f32 %v230, %v238
    %v245 = vmul.f32 %v230, %v239
    %v246 = vmul.f32 %v234, %v238
    %v247 = vmul.f32 %v234, %v239
    %v248 = vadd.f32 %v207, %v240
    %v249 = vadd.f32 %v208, %v241
    %v250 = vadd.f32 %v209, %v242
    %v251 = vadd.f32 %v210, %v243
    %v252 = vadd.f32 %v211, %v244
    %v253 = vadd.f32 %v212, %v245
    %v254 = vadd.f32 %v213, %v246
    %v255 = vadd.f32 %v214, %v247
    %256 = vrot.lane.b32.xlu0 %v33, 96
    %v257 = vpop.permute.xlu0 %256
    %258 = vrot.lane.b32.xlu0 %v35, 96
    %v259 = vpop.permute.xlu0 %258
    %260 = vrot.lane.b32.xlu0 %v34, 96
    %v261 = vpop.permute.xlu0 %260
    %262 = vrot.lane.b32.xlu0 %v36, 96
    %v263 = vpop.permute.xlu0 %262
    %vm264 = vcmp.lt.s32.totalorder %v58, 96
    %v265 = vsel %vm264, %v257, %v261
    %v266 = vsel %vm264, %v259, %v263
    %v267 = vsel %vm264, %v261, %v257
    %v268 = vsel %vm264, %v263, %v259
    %269 = vset.pattern.permute.xlu0 6
    %270 = vperm.xlu0 %269, %v17
    %v271 = vpop.permute.xlu0 %270
    %273 = vset.pattern.permute.xlu0 6
    %274 = vperm.xlu0 %273, %v18
    %v275 = vpop.permute.xlu0 %274
    %v277 = vperm.slane %v265, 0
    %v278 = vperm.slane %v267, 0
    %v279 = vperm.slane %v266, 0
    %v280 = vperm.slane %v268, 0
    %v281 = vmul.f32 %v271, %v277
    %v282 = vmul.f32 %v271, %v278
    %v283 = vmul.f32 %v275, %v277
    %v284 = vmul.f32 %v275, %v278
    %v285 = vmul.f32 %v271, %v279
    %v286 = vmul.f32 %v271, %v280
    %v287 = vmul.f32 %v275, %v279
    %v288 = vmul.f32 %v275, %v280
    %v289 = vadd.f32 %v248, %v281
    %v290 = vadd.f32 %v249, %v282
    %v291 = vadd.f32 %v250, %v283
    %v292 = vadd.f32 %v251, %v284
    %v293 = vadd.f32 %v252, %v285
    %v294 = vadd.f32 %v253, %v286
    %v295 = vadd.f32 %v254, %v287
    %v296 = vadd.f32 %v255, %v288
    %297 = vrot.lane.b32.xlu0 %v33, 95
    %v298 = vpop.permute.xlu0 %297
    %299 = vrot.lane.b32.xlu0 %v35, 95
    %v300 = vpop.permute.xlu0 %299
    %301 = vrot.lane.b32.xlu0 %v34, 95
    %v302 = vpop.permute.xlu0 %301
    %303 = vrot.lane.b32.xlu0 %v36, 95
    %v304 = vpop.permute.xlu0 %303
    %vm305 = vcmp.lt.s32.totalorder %v58, 95
    %v306 = vsel %vm305, %v298, %v302
    %v307 = vsel %vm305, %v300, %v304
    %v308 = vsel %vm305, %v302, %v298
    %v309 = vsel %vm305, %v304, %v300
    %310 = vset.pattern.permute.xlu0 7
    %311 = vperm.xlu0 %310, %v17
    %v312 = vpop.permute.xlu0 %311
    %314 = vset.pattern.permute.xlu0 7
    %315 = vperm.xlu0 %314, %v18
    %v316 = vpop.permute.xlu0 %315
    %v318 = vperm.slane %v306, 0
    %v319 = vperm.slane %v308, 0
    %v320 = vperm.slane %v307, 0
    %v321 = vperm.slane %v309, 0
    %v322 = vmul.f32 %v312, %v318
    %v323 = vmul.f32 %v312, %v319
    %v324 = vmul.f32 %v316, %v318
    %v325 = vmul.f32 %v316, %v319
    %v326 = vmul.f32 %v312, %v320
    %v327 = vmul.f32 %v312, %v321
    %v328 = vmul.f32 %v316, %v320
    %v329 = vmul.f32 %v316, %v321
    %v330 = vadd.f32 %v289, %v322
    %v331 = vadd.f32 %v290, %v323
    %v332 = vadd.f32 %v291, %v324
    %v333 = vadd.f32 %v292, %v325
    %v334 = vadd.f32 %v293, %v326
    %v335 = vadd.f32 %v294, %v327
    %v336 = vadd.f32 %v295, %v328
    %v337 = vadd.f32 %v296, %v329
    %338 = vrot.lane.b32.xlu0 %v33, 94
    %v339 = vpop.permute.xlu0 %338
    %340 = vrot.lane.b32.xlu0 %v35, 94
    %v341 = vpop.permute.xlu0 %340
    %342 = vrot.lane.b32.xlu0 %v34, 94
    %v343 = vpop.permute.xlu0 %342
    %344 = vrot.lane.b32.xlu0 %v36, 94
    %v345 = vpop.permute.xlu0 %344
    %vm346 = vcmp.lt.s32.totalorder %v58, 94
    %v347 = vsel %vm346, %v339, %v343
    %v348 = vsel %vm346, %v341, %v345
    %v349 = vsel %vm346, %v343, %v339
    %v350 = vsel %vm346, %v345, %v341
    %351 = vset.pattern.permute.xlu0 8
    %352 = vperm.xlu0 %351, %v17
    %v353 = vpop.permute.xlu0 %352
    %355 = vset.pattern.permute.xlu0 8
    %356 = vperm.xlu0 %355, %v18
    %v357 = vpop.permute.xlu0 %356
    %v359 = vperm.slane %v347, 0
    %v360 = vperm.slane %v349, 0
    %v361 = vperm.slane %v348, 0
    %v362 = vperm.slane %v350, 0
    %v363 = vmul.f32 %v353, %v359
    %v364 = vmul.f32 %v353, %v360
    %v365 = vmul.f32 %v357, %v359
    %v366 = vmul.f32 %v357, %v360
    %v367 = vmul.f32 %v353, %v361
    %v368 = vmul.f32 %v353, %v362
    %v369 = vmul.f32 %v357, %v361
    %v370 = vmul.f32 %v357, %v362
    %v371 = vadd.f32 %v330, %v363
    %v372 = vadd.f32 %v331, %v364
    %v373 = vadd.f32 %v332, %v365
    %v374 = vadd.f32 %v333, %v366
    %v375 = vadd.f32 %v334, %v367
    %v376 = vadd.f32 %v335, %v368
    %v377 = vadd.f32 %v336, %v369
    %v378 = vadd.f32 %v337, %v370
    %380 = vset.pattern.permute.xlu0 0
    %381 = vperm.xlu0 %380, %v19
    %v382 = vpop.permute.xlu0 %381
    %385 = vset.pattern.permute.xlu0 0
    %386 = vperm.xlu0 %385, %v20
    %v387 = vpop.permute.xlu0 %386
    %v389 = vadd.f32 %v371, %v382
    %v390 = vadd.f32 %v372, %v382
    %v391 = vadd.f32 %v373, %v387
    %v392 = vadd.f32 %v374, %v387
    %v393 = vadd.f32 %v375, %v382
    %v394 = vadd.f32 %v376, %v382
    %v395 = vadd.f32 %v377, %v387
    %v396 = vadd.f32 %v378, %v387
    %397 = vst [vmem:[#allocation2] sm:$0xff] %v389
    %398 = vst [vmem:[#allocation2 + $0x8] sm:$0xff] %v390
    %399 = vst [vmem:[#allocation2 + $0x10] sm:$0xff] %v391
    %400 = vst [vmem:[#allocation2 + $0x18] sm:$0xff] %v392
    %401 = vst [vmem:[#allocation2 + $0x20] sm:$0xff] %v393
    %402 = vst [vmem:[#allocation2 + $0x28] sm:$0xff] %v394
    %403 = vst [vmem:[#allocation2 + $0x30] sm:$0xff] %v395
    %404 = vst [vmem:[#allocation2 + $0x38] sm:$0xff] %v396
    // Predicated region
    $region14: #{tpu_custom_call.1} parent=1 // pred_check
      _
    $region15: #{tpu_custom_call.1} parent=1 // pred_check_branch
      %406 = sbr.rel (0) target = $region17
    $region16: #{tpu_custom_call.1} parent=1 // pred_region
      %408 = vsyncadd [#allocation3], 0
      %s409 = sshll.u32 [#allocation2], 4
      %s410 = int_to_ptr.vmem [resolvable:$true] %s409
      %s411 = sshll.u32 %s3, 4
      %s412 = int_to_ptr.hbm [resolvable:$true] %s411
      %417 = dma.vmem_to_hbm [thread:$0]  %s410, 1024, %s412, [#allocation3], 256, 256, 16
    $region17: #{tpu_custom_call.1} parent=1 // pred_fallthru
      _
    // Predicated region
    $region18: #{tpu_custom_call.1} parent=1 // pred_check
      _
    $region19: #{tpu_custom_call.1} parent=1 // pred_check_branch
      %419 = sbr.rel (0) target = $region21
    $region20: #{tpu_custom_call.1} parent=1 // pred_region
      %421 = dma.done [#allocation3], 1024
    $region21: #{tpu_custom_call.1} parent=1 // pred_fallthru
      _
    %422 = vsyncpa [#allocation3], 1

</llo_original>
